<compile_context>
chip_gen: v5e
topology: v5e:2x2
jax: 0.10.0
libtpu: 0.0.40
codegen_flags: <defaults>
</compile_context>

<pallas_src>
import functools
import math

import jax
import jax.numpy as jnp
from jax.experimental import pallas as pl
from jax.experimental.pallas import tpu as pltpu

# ----------------------------- small synthetic config ------------------------
B = 2                     # batch
TEXT_SEQ = 8              # language tokens
VOCAB = 64
EMB = 32                  # llm_emb_dim (== k_proj.weight.shape[0])
NUM_LAYERS = 2            # vlm.llm_backbone.llm.config.num_hidden_layers
IMG = 16
PATCH = 8
N_PATCH = (IMG // PATCH) ** 2
PATCH_DIM = 3 * PATCH * PATCH
SEQ = TEXT_SEQ + N_PATCH  # vision + language sequence seen by the "VLM"
HIST = 2                  # history_len
PROPRIO_DIM = 8
T_ACT = 4                 # action chunk length
A_DIM = 7                 # action dimension
TQ = HIST + T_ACT         # number of action-head query tokens
IN_DIM = A_DIM + PROPRIO_DIM + 1   # packed action-head input features
OUT_PAD = 128             # lane-dense output slab width
KV_WIDTH = NUM_LAYERS * 2 * EMB    # 128: lane-dense fused KV slab width
NEG_INF = -1e30           # block-diagonal attention mask bias


# ----------------------------- kernel 1: VLM ---------------------------------
def _vlm_kernel(text_ref, patch_ref, wvis_ref, wlayer_ref, wkv_ref, kv_ref):
    """Grid-less VLM stand-in: vision-patch projection + L unrolled layers.

    Batch is folded into the sublane axis (text rows of both batch elements,
    then patch rows of both).  K and V projections are fused into one
    (EMB, 2*EMB) bf16 matmul per layer; all layers' K|V blocks are
    concatenated into a single (B*SEQ, L*2*EMB = 128) slab so the writeback is
    ONE unmasked lane-dense store / one contiguous DMA.
    Token order is irrelevant here: the synthetic per-layer update is
    tokenwise and the downstream attention is permutation-invariant over KV.
    """
    vis = jnp.dot(patch_ref[...], wvis_ref[...],
                  preferred_element_type=jnp.float32)          # (B*Np, E) f32
    h = jnp.concatenate([text_ref[...].astype(jnp.float32), vis], axis=0)
    kv_parts = []
    # TODO(synk): switch to lax.fori_loop + dynamic lane offsets once the real
    # layer count (>~4) makes static unrolling blow up vreg live ranges.
    for l in range(NUM_LAYERS):
        h = h + jax.nn.gelu(jnp.dot(h.astype(jnp.bfloat16), wlayer_ref[l],
                                    preferred_element_type=jnp.float32))
        kv_parts.append(jnp.dot(h.astype(jnp.bfloat16), wkv_ref[l],
                                preferred_element_type=jnp.float32))
    kv_ref[...] = jnp.concatenate(kv_parts, axis=-1).astype(kv_ref.dtype)


def vlm_forward(params, input_ids, attention_mask, pixel_values, labels):
    """Synthetic stand-in for self.vlm(..., use_cache=True) + get_kv_cache_from_vlm.

    get_kv_cache_from_vlm in the reference (stack -> permute -> reshape) only
    undoes the HF head split, i.e. it is the identity on the merged-head
    layout the kernel emits directly, so the HF past_key_values round-trip is
    elided.  Returns the fused bf16 KV slab (B*SEQ, L*2*EMB); the reference
    (L, B, S, EMB) keys/values are reconstructed only on the return_vlm_kv
    cold path.
    """
    text_tok = params['embed'][input_ids].reshape(B * TEXT_SEQ, EMB)   # bf16
    bp, c, hh, ww = pixel_values.shape                                 # NCHW
    patches = pixel_values.reshape(bp, c, hh // PATCH, PATCH, ww // PATCH, PATCH)
    patches = patches.transpose(0, 2, 4, 1, 3, 5).reshape(bp * N_PATCH, PATCH_DIM)
    patches = patches.astype(jnp.bfloat16)
    # TODO(synk): attention_mask / labels only feed the VLM language-modeling
    # loss, which ActionOnlyVLA discards (planning losses hardcoded to 0.0).

    kv_all = pl.pallas_call(
        _vlm_kernel,
        out_shape=jax.ShapeDtypeStruct((B * SEQ, KV_WIDTH), jnp.bfloat16),
        in_specs=[pl.BlockSpec(memory_space=pltpu.MemorySpace.VMEM)] * 5,
        out_specs=pl.BlockSpec(memory_space=pltpu.MemorySpace.VMEM),
        # TODO(synk): at real VLA dims add grid tiling + "parallel" axis
        # (v7x megacore) and an explicit vmem_limit_bytes.
    )(text_tok, patches, params['w_vision'], params['w_layer'], params['w_kv'])
    return kv_all


# --------------------- kernel 2: ActionHead + loss (fused) -------------------
def _action_head_kernel(u_ref, kv_ref, bias_ref, win_ref, wout_ref, tgt_ref,
                        pred_ref, loss_ref, *, squared):
    """Fused: packed input projection -> L unrolled cross-attention layers over
    the fused KV slab (block-diagonal mask keeps batches independent) ->
    lane-dense (8,128) output projection -> action loss.

    TODO(synk): single fused-head cross-attention stand-in; the opaque
    ActionHead's real multi-head / query-self-attention semantics are not
    reproduced.
    """
    # One (B*TQ, IN_DIM) x (IN_DIM, EMB) MXU push replaces the three separate
    # proprio / noisy-action / timestep projections.
    q = jnp.dot(u_ref[...], win_ref[...],
                preferred_element_type=jnp.float32)              # (B*TQ, E) f32
    scale = 1.0 / math.sqrt(EMB)
    bias = bias_ref[...]                                         # (B*TQ, B*SEQ)
    # TODO(synk): lax.fori_loop once the real layer count makes unrolling bad.
    for l in range(NUM_LAYERS):
        k = kv_ref[:, 2 * EMB * l: 2 * EMB * l + EMB]            # (B*S, E) bf16
        v = kv_ref[:, 2 * EMB * l + EMB: 2 * EMB * (l + 1)]
        s = jax.lax.dot_general(                                  # NT matmul
            q.astype(jnp.bfloat16), k, (((1,), (1,)), ((), ())),
            preferred_element_type=jnp.float32) * scale + bias
        s = s - jnp.max(s, axis=-1, keepdims=True)
        e = jnp.exp(s)
        # exact reciprocal for tolerance parity with the reference softmax
        p = e * pl.reciprocal(jnp.sum(e, axis=-1, keepdims=True), approx=False)
        q = q + jnp.dot(p.astype(jnp.bfloat16), v,
                        preferred_element_type=jnp.float32)
    # Epilogue: action-token queries are the first B*T_ACT (=8) rows, projected
    # through a zero-padded (EMB, 128) weight -> one (8,128) vreg-tile store
    # (unmasked vst, aligned DMA); the L1/L2 loss is fused in.  Padded lanes
    # contribute exactly 0 (zero weight columns, zero-padded target).
    q_act = q[0:B * T_ACT, :]
    pred = jnp.dot(q_act.astype(jnp.bfloat16), wout_ref[...],
                   preferred_element_type=jnp.float32)           # (8, 128)
    pred_ref[...] = pred
    d = pred - tgt_ref[...]
    d = d * d if squared else jnp.abs(d)
    loss_ref[0, 0] = jnp.sum(d) * (1.0 / (B * T_ACT * A_DIM))


def action_head_forward(params, batch, kv_all, training=True,
                        action_loss_type='l1'):
    """training_algo == 'bc' path of ActionOnlyVLA.action_head_forward."""
    actions = batch['actions']
    proprios = batch['proprios']
    noisy_actions = jnp.zeros_like(actions)             # bc: zeros_like(actions)
    t = jnp.zeros((B,), jnp.float32)                    # bc: t = 0
    # TODO(synk): flow_matching branch (CondOTProbPath, skewed_timestep_sample,
    # randn noise) and the three_d Encoder branch are not reproduced.

    # Pack [noisy_actions | 0 | t] rows (action tokens first -> clean (8,E)
    # epilogue slice) and [0 | proprios | 0] rows (history tokens), flattened
    # to (B*TQ, IN_DIM) so ONE in-kernel matmul against the row-stacked weight
    # reproduces act_tok + t*w_time and prop_tok.
    t_col = jnp.broadcast_to(t.reshape(B, 1, 1), (B, T_ACT, 1))
    act_rows = jnp.concatenate(
        [noisy_actions, jnp.zeros((B, T_ACT, PROPRIO_DIM), jnp.float32), t_col],
        axis=-1).reshape(B * T_ACT, IN_DIM)
    prop_rows = jnp.concatenate(
        [jnp.zeros((B, HIST, A_DIM), jnp.float32), proprios,
         jnp.zeros((B, HIST, 1), jnp.float32)],
        axis=-1).reshape(B * HIST, IN_DIM)
    u = jnp.concatenate([act_rows, prop_rows], axis=0).astype(jnp.bfloat16)

    # Block-diagonal additive mask keeping each query row attending only to
    # its own batch element's KV rows (batch is folded into sublanes).
    row_batch = jnp.concatenate([jnp.repeat(jnp.arange(B), T_ACT),
                                 jnp.repeat(jnp.arange(B), HIST)])
    col_batch = jnp.concatenate([jnp.repeat(jnp.arange(B), TEXT_SEQ),
                                 jnp.repeat(jnp.arange(B), N_PATCH)])
    bias = jnp.where(row_batch[:, None] == col_batch[None, :],
                     0.0, NEG_INF).astype(jnp.float32)

    tgt_pad = jnp.pad(actions.reshape(B * T_ACT, A_DIM),
                      ((0, 0), (0, OUT_PAD - A_DIM)))

    pred_pad, loss = pl.pallas_call(
        functools.partial(_action_head_kernel,
                          squared=(action_loss_type == 'l2')),
        out_shape=(jax.ShapeDtypeStruct((B * T_ACT, OUT_PAD), jnp.float32),
                   jax.ShapeDtypeStruct((1, 1), jnp.float32)),
        in_specs=[pl.BlockSpec(memory_space=pltpu.MemorySpace.VMEM)] * 6,
        out_specs=(pl.BlockSpec(memory_space=pltpu.MemorySpace.VMEM),
                   pl.BlockSpec(memory_space=pltpu.MemorySpace.SMEM)),
        # TODO(synk): at real dims add an L grid axis ("arbitrary") with
        # per-layer (B,S,E) KV blocks, a resident q accumulator scratch, and
        # vmem_limit_bytes sized for v7x's 64 MiB VMEM.
    )(u, kv_all, bias, params['w_in'], params['w_out_pad'], tgt_pad)

    predicted_actions = pred_pad[:, :A_DIM].reshape(B, T_ACT, A_DIM)
    return predicted_actions, loss[0, 0]


# ----------------------------- parameters ------------------------------------
def init_params(key):
    ks = jax.random.split(key, 9)

    def w(k, shape, scale=0.05):
        # bf16 storage: MXU operands are bf16 (f32 accumulation in-kernel).
        return (scale * jax.random.normal(k, shape)).astype(jnp.bfloat16)

    w_k = w(ks[3], (NUM_LAYERS, EMB, EMB))
    w_v = w(ks[4], (NUM_LAYERS, EMB, EMB))
    w_proprio = w(ks[5], (PROPRIO_DIM, EMB))
    w_action_in = w(ks[6], (A_DIM, EMB))
    w_time = w(ks[7], (1, EMB))
    w_out = w(ks[8], (EMB, A_DIM))
    return dict(
        embed=w(ks[0], (VOCAB, EMB)),
        w_vision=w(ks[1], (PATCH_DIM, EMB)),
        w_layer=w(ks[2], (NUM_LAYERS, EMB, EMB)),
        # K|V projections fused along the output dim -> one MXU push per layer.
        w_kv=jnp.concatenate([w_k, w_v], axis=-1),            # (L, E, 2E)
        # action-head input projections row-stacked: [w_action_in; w_proprio;
        # w_time] matching the packed `u` feature layout.
        w_in=jnp.concatenate([w_action_in, w_proprio, w_time], axis=0),
        # output projection zero-padded to a lane-dense 128-wide slab.
        w_out_pad=jnp.pad(w_out, ((0, 0), (0, OUT_PAD - A_DIM))),
    )


# ----------------------------- forward (mirrors the PyTorch module) ----------
def forward(params, batch, training=True, return_vlm_kv=False):
    kv_all = vlm_forward(params,
                         input_ids=batch['input_ids'],
                         attention_mask=batch['attention_mask'],
                         pixel_values=batch['pixel_values'],
                         labels=batch['labels'])
    predicted_actions, action_loss = action_head_forward(
        params, batch, kv_all, training=training)
    planning_losses = {'language_planning_loss': 0.0,
                       'visual_planning_loss': 0.0,
                       'image_foresight_planning_loss': 0.0}
    if return_vlm_kv:
        # Cold path only: reconstruct the reference (L, B, S, EMB) layout from
        # the fused slab (rows: text b0..bB-1, then patches b0..bB-1; lanes:
        # [l0 K | l0 V | l1 K | l1 V]).
        kv = kv_all.astype(jnp.float32)
        text_part = kv[:B * TEXT_SEQ].reshape(B, TEXT_SEQ, NUM_LAYERS, 2, EMB)
        vis_part = kv[B * TEXT_SEQ:].reshape(B, N_PATCH, NUM_LAYERS, 2, EMB)
        per_b = jnp.concatenate([text_part, vis_part], axis=1)   # (B,S,L,2,E)
        per_b = per_b.transpose(2, 3, 0, 1, 4)                   # (L,2,B,S,E)
        return (predicted_actions, planning_losses, action_loss,
                per_b[:, 0], per_b[:, 1])
    return predicted_actions, planning_losses, action_loss


# ----------------------------- main -------------------------------------------
if __name__ == "__main__":
    key = jax.random.PRNGKey(0)
    pkey, k0, k1, k2, k3 = jax.random.split(key, 5)
    params = init_params(pkey)

    batch = {
        'input_ids': jax.random.randint(k0, (B, TEXT_SEQ), 0, VOCAB,
                                        dtype=jnp.int32),
        'attention_mask': jnp.ones((B, TEXT_SEQ), jnp.int32),
        'pixel_values': jax.random.normal(k1, (B, 3, IMG, IMG), jnp.float32),
        'labels': jnp.full((B, TEXT_SEQ), -100, jnp.int32),
        'proprios': jax.random.normal(k2, (B, HIST, PROPRIO_DIM), jnp.float32),
        'actions': jax.random.normal(k3, (B, T_ACT, A_DIM), jnp.float32),
    }

    predicted_actions, planning_losses, action_loss = forward(
        params, batch, training=True)
    jax.block_until_ready((predicted_actions, action_loss))
    assert predicted_actions.shape == (B, T_ACT, A_DIM)
    assert action_loss.shape == ()
    print("KERNEL_OK")
</pallas_src>

<mosaic_0001>
module attributes {stable_mosaic.version = 11 : i64} {
  func.func @_vlm_kernel(%arg0: memref<16x32xbf16, #tpu.memory_space<vmem>>, %arg1: memref<8x192xbf16, #tpu.memory_space<vmem>>, %arg2: memref<192x32xbf16, #tpu.memory_space<vmem>>, %arg3: memref<2x32x32xbf16, #tpu.memory_space<vmem>>, %arg4: memref<2x32x64xbf16, #tpu.memory_space<vmem>>, %arg5: memref<24x128xbf16, #tpu.memory_space<vmem>>) attributes {dimension_semantics = [], scalar_prefetch = 0 : i64, scratch_operands = 0 : i64, tpu.core_type = #tpu.core_type<tc>} {
    %c0 = arith.constant 0 : index
    %c0_0 = arith.constant 0 : index
    %0 = vector.load %arg1[%c0, %c0_0] : memref<8x192xbf16, #tpu.memory_space<vmem>>, vector<8x192xbf16>
    %c0_1 = arith.constant 0 : index
    %c0_2 = arith.constant 0 : index
    %1 = vector.load %arg2[%c0_1, %c0_2] : memref<192x32xbf16, #tpu.memory_space<vmem>>, vector<192x32xbf16>
    %cst = arith.constant dense<0.000000e+00> : vector<8x32xf32>
    %2 = tpu.matmul %0, %1, %cst {dimension_numbers = #tpu.dot_dimension_numbers<[1], [0], [0], [1], [0, 0, 1, 1], [], []>} : vector<8x192xbf16>, vector<192x32xbf16>, vector<8x32xf32> -> vector<8x32xf32>
    %c0_3 = arith.constant 0 : index
    %c0_4 = arith.constant 0 : index
    %3 = vector.load %arg0[%c0_3, %c0_4] : memref<16x32xbf16, #tpu.memory_space<vmem>>, vector<16x32xbf16>
    %4 = arith.extf %3 : vector<16x32xbf16> to vector<16x32xf32>
    %5 = tpu.concatenate %4, %2 in 0 : vector<16x32xf32>, vector<8x32xf32> -> vector<24x32xf32>
    %6 = arith.truncf %5 : vector<24x32xf32> to vector<24x32xbf16>
    %c0_5 = arith.constant 0 : index
    %c0_6 = arith.constant 0 : index
    %c0_7 = arith.constant 0 : index
    %7 = vector.load %arg3[%c0_5, %c0_6, %c0_7] : memref<2x32x32xbf16, #tpu.memory_space<vmem>>, vector<1x32x32xbf16>
    %8 = vector.shape_cast %7 : vector<1x32x32xbf16> to vector<32x32xbf16>
    %cst_8 = arith.constant dense<0.000000e+00> : vector<24x32xf32>
    %9 = tpu.matmul %6, %8, %cst_8 {dimension_numbers = #tpu.dot_dimension_numbers<[1], [0], [0], [1], [0, 0, 1, 1], [], []>} : vector<24x32xbf16>, vector<32x32xbf16>, vector<24x32xf32> -> vector<24x32xf32>
    %10 = arith.mulf %9, %9 : vector<24x32xf32>
    %11 = arith.mulf %9, %10 : vector<24x32xf32>
    %cst_9 = arith.constant 4.471500e-02 : f32
    %12 = vector.broadcast %cst_9 : f32 to vector<24x32xf32>
    %13 = arith.mulf %12, %11 : vector<24x32xf32>
    %14 = arith.addf %9, %13 : vector<24x32xf32>
    %cst_10 = arith.constant 0.797884583 : f32
    %15 = vector.broadcast %cst_10 : f32 to vector<24x32xf32>
    %16 = arith.mulf %15, %14 : vector<24x32xf32>
    %17 = math.tanh %16 : vector<24x32xf32>
    %cst_11 = arith.constant 1.000000e+00 : f32
    %18 = vector.broadcast %cst_11 : f32 to vector<24x32xf32>
    %19 = arith.addf %18, %17 : vector<24x32xf32>
    %cst_12 = arith.constant 5.000000e-01 : f32
    %20 = vector.broadcast %cst_12 : f32 to vector<24x32xf32>
    %21 = arith.mulf %20, %19 : vector<24x32xf32>
    %22 = arith.mulf %9, %21 : vector<24x32xf32>
    %23 = arith.addf %5, %22 : vector<24x32xf32>
    %24 = arith.truncf %23 : vector<24x32xf32> to vector<24x32xbf16>
    %c0_13 = arith.constant 0 : index
    %c0_14 = arith.constant 0 : index
    %c0_15 = arith.constant 0 : index
    %25 = vector.load %arg4[%c0_13, %c0_14, %c0_15] : memref<2x32x64xbf16, #tpu.memory_space<vmem>>, vector<1x32x64xbf16>
    %26 = vector.shape_cast %25 : vector<1x32x64xbf16> to vector<32x64xbf16>
    %cst_16 = arith.constant dense<0.000000e+00> : vector<24x64xf32>
    %27 = tpu.matmul %24, %26, %cst_16 {dimension_numbers = #tpu.dot_dimension_numbers<[1], [0], [0], [1], [0, 0, 1, 1], [], []>} : vector<24x32xbf16>, vector<32x64xbf16>, vector<24x64xf32> -> vector<24x64xf32>
    %28 = arith.truncf %23 : vector<24x32xf32> to vector<24x32xbf16>
    %c1 = arith.constant 1 : index
    %c0_17 = arith.constant 0 : index
    %c0_18 = arith.constant 0 : index
    %29 = vector.load %arg3[%c1, %c0_17, %c0_18] : memref<2x32x32xbf16, #tpu.memory_space<vmem>>, vector<1x32x32xbf16>
    %30 = vector.shape_cast %29 : vector<1x32x32xbf16> to vector<32x32xbf16>
    %cst_19 = arith.constant dense<0.000000e+00> : vector<24x32xf32>
    %31 = tpu.matmul %28, %30, %cst_19 {dimension_numbers = #tpu.dot_dimension_numbers<[1], [0], [0], [1], [0, 0, 1, 1], [], []>} : vector<24x32xbf16>, vector<32x32xbf16>, vector<24x32xf32> -> vector<24x32xf32>
    %32 = arith.mulf %31, %31 : vector<24x32xf32>
    %33 = arith.mulf %31, %32 : vector<24x32xf32>
    %cst_20 = arith.constant 4.471500e-02 : f32
    %34 = vector.broadcast %cst_20 : f32 to vector<24x32xf32>
    %35 = arith.mulf %34, %33 : vector<24x32xf32>
    %36 = arith.addf %31, %35 : vector<24x32xf32>
    %cst_21 = arith.constant 0.797884583 : f32
    %37 = vector.broadcast %cst_21 : f32 to vector<24x32xf32>
    %38 = arith.mulf %37, %36 : vector<24x32xf32>
    %39 = math.tanh %38 : vector<24x32xf32>
    %cst_22 = arith.constant 1.000000e+00 : f32
    %40 = vector.broadcast %cst_22 : f32 to vector<24x32xf32>
    %41 = arith.addf %40, %39 : vector<24x32xf32>
    %cst_23 = arith.constant 5.000000e-01 : f32
    %42 = vector.broadcast %cst_23 : f32 to vector<24x32xf32>
    %43 = arith.mulf %42, %41 : vector<24x32xf32>
    %44 = arith.mulf %31, %43 : vector<24x32xf32>
    %45 = arith.addf %23, %44 : vector<24x32xf32>
    %46 = arith.truncf %45 : vector<24x32xf32> to vector<24x32xbf16>
    %c1_24 = arith.constant 1 : index
    %c0_25 = arith.constant 0 : index
    %c0_26 = arith.constant 0 : index
    %47 = vector.load %arg4[%c1_24, %c0_25, %c0_26] : memref<2x32x64xbf16, #tpu.memory_space<vmem>>, vector<1x32x64xbf16>
    %48 = vector.shape_cast %47 : vector<1x32x64xbf16> to vector<32x64xbf16>
    %cst_27 = arith.constant dense<0.000000e+00> : vector<24x64xf32>
    %49 = tpu.matmul %46, %48, %cst_27 {dimension_numbers = #tpu.dot_dimension_numbers<[1], [0], [0], [1], [0, 0, 1, 1], [], []>} : vector<24x32xbf16>, vector<32x64xbf16>, vector<24x64xf32> -> vector<24x64xf32>
    %50 = tpu.concatenate %27, %49 in 1 : vector<24x64xf32>, vector<24x64xf32> -> vector<24x128xf32>
    %51 = arith.truncf %50 : vector<24x128xf32> to vector<24x128xbf16>
    %c0_28 = arith.constant 0 : index
    %c0_29 = arith.constant 0 : index
    %52 = vector.load %arg5[%c0_28, %c0_29] : memref<24x128xbf16, #tpu.memory_space<vmem>>, vector<24x128xbf16>
    tpu.vector_store %arg5[%c0_28, %c0_29], %51 {strides = array<i32>} : memref<24x128xbf16, #tpu.memory_space<vmem>>, vector<24x128xbf16>,
    return
  }
}

</mosaic_0001>

<llo_original>
// kernel: tpu_custom_call.1
$region0: #{tpu_custom_call.1}
  #allocation0 [shape = 'u32[]', space=smem, size = 0x4, offset = 0x4, fixed_abs, tag = 'smem constant byte address 0x4 - core index']
  #allocation1 [shape = 'u32[72,128]{1,0:T(1,128)}', space=vmem, size = 0x9000, scoped, tag = 'internal scratch']
  %s0 = inlined_call_operand.vmem [shape: bf16[16,32], index: 0, kind: input, shape index: {}]
  %s1 = inlined_call_operand.vmem [shape: bf16[8,192], index: 1, kind: input, shape index: {}]
  %s2 = inlined_call_operand.vmem [shape: bf16[192,32], index: 2, kind: input, shape index: {}]
  %s3 = inlined_call_operand.vmem [shape: bf16[2,32,32], index: 3, kind: input, shape index: {}]
  %s4 = inlined_call_operand.vmem [shape: bf16[2,32,64], index: 4, kind: input, shape index: {}]
  %s5 = inlined_call_operand.hbm [shape: bf16[24,128], index: 5, kind: output, shape index: {}]
  %s6 = sld [smem:[#allocation0]]
  $region30: #{tpu_custom_call.1} parent=0
    _
  %s8 = ssub.s32 1, %s6
  %s9 = scalar_select 0, %s8, %s6
  $region1: #{tpu_custom_call.1} parent=0
    #allocation2 [shape = 'u8[6144]{0}', space=vmem, size = 0x1800, scoped, tag = 'output window, operand 0, single buffered']
    #allocation3 [shape = 's32[1]{0}', space=sflag, size = 0x4, scoped, tag = 'scoped memory for tpu_custom_call.1']
    %10 = vsyncpa [#allocation3], 0
    // Predicated region
    $region2: #{tpu_custom_call.1} parent=1 // pred_check
      _
    $region3: #{tpu_custom_call.1} parent=1 // pred_check_branch
      %12 = sbr.rel (0) target = $region5
    $region4: #{tpu_custom_call.1} parent=1 // pred_region
      _
    $region5: #{tpu_custom_call.1} parent=1 // pred_fallthru
      _
    // Predicated region
    $region6: #{tpu_custom_call.1} parent=1 // pred_check
      _
    $region7: #{tpu_custom_call.1} parent=1 // pred_check_branch
      %14 = sbr.rel (0) target = $region9
    $region8: #{tpu_custom_call.1} parent=1 // pred_region
      _
    $region9: #{tpu_custom_call.1} parent=1 // pred_fallthru
      _
    // Predicated region
    $region10: #{tpu_custom_call.1} parent=1 // pred_check
      _
    $region11: #{tpu_custom_call.1} parent=1 // pred_check_branch
      %16 = sbr.rel (0) target = $region13
    $region12: #{tpu_custom_call.1} parent=1 // pred_region
      _
    $region13: #{tpu_custom_call.1} parent=1 // pred_fallthru
      _
    // Predicated region
    $region14: #{tpu_custom_call.1} parent=1 // pred_check
      _
    $region15: #{tpu_custom_call.1} parent=1 // pred_check_branch
      %18 = sbr.rel (0) target = $region17
    $region16: #{tpu_custom_call.1} parent=1 // pred_region
      _
    $region17: #{tpu_custom_call.1} parent=1 // pred_fallthru
      _
    // Predicated region
    $region18: #{tpu_custom_call.1} parent=1 // pred_check
      _
    $region19: #{tpu_custom_call.1} parent=1 // pred_check_branch
      %20 = sbr.rel (0) target = $region21
    $region20: #{tpu_custom_call.1} parent=1 // pred_region
      _
    $region21: #{tpu_custom_call.1} parent=1 // pred_fallthru
      _
    %v22 = vld [vmem:[%s1] sm:$0xff]
    %v23 = vld [vmem:[%s2] sm:$0xf]
    %v24 = vld [vmem:[%s2 + $0x4] sm:$0xf]
    %v25 = vld [vmem:[%s2 + $0x8] sm:$0xf]
    %v26 = vld [vmem:[%s2 + $0xc] sm:$0xf]
    %v27 = vld [vmem:[%s2 + $0x10] sm:$0xf]
    %v28 = vld [vmem:[%s2 + $0x14] sm:$0xf]
    %v29 = vld [vmem:[%s2 + $0x18] sm:$0xf]
    %v30 = vld [vmem:[%s2 + $0x1c] sm:$0xf]
    %v31 = vld [vmem:[%s2 + $0x20] sm:$0xf]
    %v32 = vld [vmem:[%s2 + $0x24] sm:$0xf]
    %v33 = vld [vmem:[%s2 + $0x28] sm:$0xf]
    %v34 = vld [vmem:[%s2 + $0x2c] sm:$0xf]
    %v35 = vld [vmem:[%s2 + $0x30] sm:$0xf]
    %v36 = vld [vmem:[%s2 + $0x34] sm:$0xf]
    %v37 = vld [vmem:[%s2 + $0x38] sm:$0xf]
    %v38 = vld [vmem:[%s2 + $0x3c] sm:$0xf]
    %v39 = vld [vmem:[%s2 + $0x40] sm:$0xf]
    %v40 = vld [vmem:[%s2 + $0x44] sm:$0xf]
    %v41 = vld [vmem:[%s2 + $0x48] sm:$0xf]
    %v42 = vld [vmem:[%s2 + $0x4c] sm:$0xf]
    %v43 = vld [vmem:[%s2 + $0x50] sm:$0xf]
    %v44 = vld [vmem:[%s2 + $0x54] sm:$0xf]
    %v45 = vld [vmem:[%s2 + $0x58] sm:$0xf]
    %v46 = vld [vmem:[%s2 + $0x5c] sm:$0xf]
    %v48 = vunpack.c.l.b16 %v22
    %v49 = vunpack.c.h.b16 %v22
    %v50 = vpack.c.b16 %v48, %v48
    %v51 = vpack.c.b16 %v49, %v49
    %v77 = vunpack.c.l.b16 %v23
    %v78 = vunpack.c.l.b16 %v24
    %v79 = vunpack.c.l.b16 %v25
    %v80 = vunpack.c.l.b16 %v26
    %v81 = vunpack.c.l.b16 %v27
    %v82 = vunpack.c.l.b16 %v28
    %v83 = vunpack.c.l.b16 %v29
    %v84 = vunpack.c.l.b16 %v30
    %v85 = vunpack.c.l.b16 %v31
    %v86 = vunpack.c.l.b16 %v32
    %v87 = vunpack.c.l.b16 %v33
    %v88 = vunpack.c.l.b16 %v34
    %v89 = vunpack.c.l.b16 %v35
    %v90 = vunpack.c.l.b16 %v36
    %v91 = vunpack.c.l.b16 %v37
    %v92 = vunpack.c.l.b16 %v38
    %v93 = vunpack.c.l.b16 %v39
    %v94 = vunpack.c.l.b16 %v40
    %v95 = vunpack.c.l.b16 %v41
    %v96 = vunpack.c.l.b16 %v42
    %v97 = vunpack.c.l.b16 %v43
    %v98 = vunpack.c.l.b16 %v44
    %v99 = vunpack.c.l.b16 %v45
    %v100 = vunpack.c.l.b16 %v46
    %v101 = vpack.c.b16 %v78, %v77
    %v102 = vpack.c.b16 %v80, %v79
    %v103 = vpack.c.b16 %v82, %v81
    %v104 = vpack.c.b16 %v84, %v83
    %v105 = vpack.c.b16 %v86, %v85
    %v106 = vpack.c.b16 %v88, %v87
    %v107 = vpack.c.b16 %v90, %v89
    %v108 = vpack.c.b16 %v92, %v91
    %v109 = vpack.c.b16 %v94, %v93
    %v110 = vpack.c.b16 %v96, %v95
    %v111 = vpack.c.b16 %v98, %v97
    %v112 = vpack.c.b16 %v100, %v99
    %vm125 = vcmask 523264
    %v127 = vsel %vm125, %v51, 0
    %129 = vmatpush.bf16.msra.mxu0 %v108
    %130 = vmatpush.bf16.msra.mxu0 %v107
    %131 = vmatpush.bf16.msra.mxu0 %v106
    %132 = vmatpush.bf16.msra.mxu0 %v105
    %133 = vmatpush.bf16.msra.mxu0 %v104
    %134 = vmatpush.bf16.msra.mxu0 %v103
    %135 = vmatpush.bf16.msra.mxu0 %v102
    %136 = vmatpush.bf16.msra.mxu0 %v101
    %137 = vmatmul.bf16.gmra.mxu0 %v50
    %v138 = vpop.f32.mrf.mxu0
    %v139 = vadd.f32 0.0, %v138
    %v140 = vpop.f32.mrf.mxu0
    %141 = vdwg.mxu0
    %142 = vmatpush.bf16.msra.mxu0 0
    %143 = vmatpush.bf16.msra.mxu0 0
    %144 = vmatpush.bf16.msra.mxu0 0
    %145 = vmatpush.bf16.msra.mxu0 0
    %146 = vmatpush.bf16.msra.mxu0 %v112
    %147 = vmatpush.bf16.msra.mxu0 %v111
    %148 = vmatpush.bf16.msra.mxu0 %v110
    %149 = vmatpush.bf16.msra.mxu0 %v109
    %150 = vmatmul.bf16.gmra.mxu0 %v127
    %v151 = vpop.f32.mrf.mxu0
    %v152 = vadd.f32 %v139, %v151
    %v153 = vpop.f32.mrf.mxu0
    %154 = vdwg.mxu0
    %v155 = vld [vmem:[%s0] sm:$0xf]
    %v156 = vld [vmem:[%s0 + $0x4] sm:$0xf]
    %v157 = vunpack.c.l.bf16 %v155
    %v158 = vunpack.c.l.bf16 %v156
    %v159 = vpack.c.bf16 %v158, %v157
    %v160 = vpack.c.bf16 %v152, %v152
    %v161 = vld [vmem:[%s3] sm:$0xf]
    %v162 = vld [vmem:[%s3 + $0x4] sm:$0xf]
    %v163 = vld [vmem:[%s3 + $0x8] sm:$0xf]
    %v164 = vld [vmem:[%s3 + $0xc] sm:$0xf]
    %v169 = vunpack.c.l.b16 %v161
    %v170 = vunpack.c.l.b16 %v162
    %v171 = vunpack.c.l.b16 %v163
    %v172 = vunpack.c.l.b16 %v164
    %v173 = vpack.c.b16 %v170, %v169
    %v174 = vpack.c.b16 %v172, %v171
    %vm177 = vcmask 261120
    %v179 = vsel %vm177, %v159, 0
    %v182 = vsel %vm177, %v160, 0
    %184 = vmatpush.bf16.msra.mxu0 0
    %185 = vmatpush.bf16.msra.mxu0 0
    %186 = vmatpush.bf16.msra.mxu0 0
    %187 = vmatpush.bf16.msra.mxu0 0
    %188 = vmatpush.bf16.msra.mxu0 0
    %189 = vmatpush.bf16.msra.mxu0 0
    %190 = vmatpush.bf16.msra.mxu0 %v174
    %191 = vmatpush.bf16.msra.mxu0 %v173
    %192 = vmatmul.bf16.gmra.mxu0 %v179
    %v193 = vpop.f32.mrf.mxu0
    %v194 = vadd.f32 0.0, %v193
    %v195 = vpop.f32.mrf.mxu0
    %v196 = vadd.f32 0.0, %v195
    %197 = vmatmul.bf16.gmra.mxu0 %v182
    %v198 = vpop.f32.mrf.mxu0
    %v199 = vadd.f32 0.0, %v198
    %v200 = vpop.f32.mrf.mxu0
    %201 = vdwg.mxu0
    %v202 = vmul.f32 %v194, %v194
    %v203 = vmul.f32 %v196, %v196
    %v204 = vmul.f32 %v199, %v199
    %v205 = vmul.f32 %v194, %v202
    %v206 = vmul.f32 %v196, %v203
    %v207 = vmul.f32 %v199, %v204
    %v208 = vmul.f32 %v205, 0.044715
    %v209 = vmul.f32 %v206, 0.044715
    %v210 = vmul.f32 %v207, 0.044715
    %v211 = vadd.f32 %v194, %v208
    %v212 = vadd.f32 %v196, %v209
    %v213 = vadd.f32 %v199, %v210
    %v214 = vmul.f32 %v211, 0.7978846
    %v215 = vmul.f32 %v212, 0.7978846
    %v216 = vmul.f32 %v213, 0.7978846
    %v217 = vtanh.pop %v214
    %v218 = vtanh.pop %v215
    %v219 = vtanh.pop %v216
    %v220 = vadd.f32 %v217, 1.0
    %v221 = vadd.f32 %v218, 1.0
    %v222 = vadd.f32 %v219, 1.0
    %v223 = vmul.f32 %v220, 0.5
    %v224 = vmul.f32 %v221, 0.5
    %v225 = vmul.f32 %v222, 0.5
    %v226 = vmul.f32 %v194, %v223
    %v227 = vmul.f32 %v196, %v224
    %v228 = vmul.f32 %v199, %v225
    %v229 = vadd.f32 %v157, %v226
    %v230 = vadd.f32 %v158, %v227
    %v231 = vadd.f32 %v152, %v228
    %v232 = vpack.c.bf16 %v230, %v229
    %v233 = vpack.c.bf16 %v231, %v231
    %v234 = vld [vmem:[%s4] sm:$0xf]
    %v235 = vld [vmem:[%s4 + $0x4] sm:$0xf]
    %v236 = vld [vmem:[%s4 + $0x8] sm:$0xf]
    %v237 = vld [vmem:[%s4 + $0xc] sm:$0xf]
    %v242 = vunpack.c.l.b16 %v234
    %v243 = vunpack.c.l.b16 %v235
    %v244 = vunpack.c.l.b16 %v236
    %v245 = vunpack.c.l.b16 %v237
    %v246 = vpack.c.b16 %v243, %v242
    %v247 = vpack.c.b16 %v245, %v244
    %v251 = vsel %vm177, %v232, 0
    %v254 = vsel %vm177, %v233, 0
    %256 = vmatpush.bf16.msra.mxu0 0
    %257 = vmatpush.bf16.msra.mxu0 0
    %258 = vmatpush.bf16.msra.mxu0 0
    %259 = vmatpush.bf16.msra.mxu0 0
    %260 = vmatpush.bf16.msra.mxu0 0
    %261 = vmatpush.bf16.msra.mxu0 0
    %262 = vmatpush.bf16.msra.mxu0 %v247
    %263 = vmatpush.bf16.msra.mxu0 %v246
    %264 = vmatmul.bf16.gmra.mxu0 %v251
    %v265 = vpop.f32.mrf.mxu0
    %v266 = vadd.f32 0.0, %v265
    %v267 = vpop.f32.mrf.mxu0
    %v268 = vadd.f32 0.0, %v267
    %269 = vmatmul.bf16.gmra.mxu0 %v254
    %v270 = vpop.f32.mrf.mxu0
    %v271 = vadd.f32 0.0, %v270
    %v272 = vpop.f32.mrf.mxu0
    %273 = vdwg.mxu0
    %s274 = scalar_lea.vmem %s3, 16
    %v275 = vld [vmem:[%s274] sm:$0xf]
    %v276 = vld [vmem:[%s274 + $0x4] sm:$0xf]
    %v277 = vld [vmem:[%s274 + $0x8] sm:$0xf]
    %v278 = vld [vmem:[%s274 + $0xc] sm:$0xf]
    %v283 = vunpack.c.l.b16 %v275
    %v284 = vunpack.c.l.b16 %v276
    %v285 = vunpack.c.l.b16 %v277
    %v286 = vunpack.c.l.b16 %v278
    %v287 = vpack.c.b16 %v284, %v283
    %v288 = vpack.c.b16 %v286, %v285
    %291 = vmatpush.bf16.msra.mxu0 0
    %292 = vmatpush.bf16.msra.mxu0 0
    %293 = vmatpush.bf16.msra.mxu0 0
    %294 = vmatpush.bf16.msra.mxu0 0
    %295 = vmatpush.bf16.msra.mxu0 0
    %296 = vmatpush.bf16.msra.mxu0 0
    %297 = vmatpush.bf16.msra.mxu0 %v288
    %298 = vmatpush.bf16.msra.mxu0 %v287
    %299 = vmatmul.bf16.gmra.mxu0 %v251
    %v300 = vpop.f32.mrf.mxu0
    %v301 = vadd.f32 0.0, %v300
    %v302 = vpop.f32.mrf.mxu0
    %v303 = vadd.f32 0.0, %v302
    %304 = vmatmul.bf16.gmra.mxu0 %v254
    %v305 = vpop.f32.mrf.mxu0
    %v306 = vadd.f32 0.0, %v305
    %v307 = vpop.f32.mrf.mxu0
    %308 = vdwg.mxu0
    %v309 = vmul.f32 %v301, %v301
    %v310 = vmul.f32 %v303, %v303
    %v311 = vmul.f32 %v306, %v306
    %v312 = vmul.f32 %v301, %v309
    %v313 = vmul.f32 %v303, %v310
    %v314 = vmul.f32 %v306, %v311
    %v315 = vmul.f32 %v312, 0.044715
    %v316 = vmul.f32 %v313, 0.044715
    %v317 = vmul.f32 %v314, 0.044715
    %v318 = vadd.f32 %v301, %v315
    %v319 = vadd.f32 %v303, %v316
    %v320 = vadd.f32 %v306, %v317
    %v321 = vmul.f32 %v318, 0.7978846
    %v322 = vmul.f32 %v319, 0.7978846
    %v323 = vmul.f32 %v320, 0.7978846
    %v324 = vtanh.pop %v321
    %v325 = vtanh.pop %v322
    %v326 = vtanh.pop %v323
    %v327 = vadd.f32 %v324, 1.0
    %v328 = vadd.f32 %v325, 1.0
    %v329 = vadd.f32 %v326, 1.0
    %v330 = vmul.f32 %v327, 0.5
    %v331 = vmul.f32 %v328, 0.5
    %v332 = vmul.f32 %v329, 0.5
    %v333 = vmul.f32 %v301, %v330
    %v334 = vmul.f32 %v303, %v331
    %v335 = vmul.f32 %v306, %v332
    %v336 = vadd.f32 %v229, %v333
    %v337 = vadd.f32 %v230, %v334
    %v338 = vadd.f32 %v231, %v335
    %v339 = vpack.c.bf16 %v337, %v336
    %v340 = vpack.c.bf16 %v338, %v338
    %s341 = scalar_lea.vmem %s4, 16
    %v342 = vld [vmem:[%s341] sm:$0xf]
    %v343 = vld [vmem:[%s341 + $0x4] sm:$0xf]
    %v344 = vld [vmem:[%s341 + $0x8] sm:$0xf]
    %v345 = vld [vmem:[%s341 + $0xc] sm:$0xf]
    %v350 = vunpack.c.l.b16 %v342
    %v351 = vunpack.c.l.b16 %v343
    %v352 = vunpack.c.l.b16 %v344
    %v353 = vunpack.c.l.b16 %v345
    %v354 = vpack.c.b16 %v351, %v350
    %v355 = vpack.c.b16 %v353, %v352
    %v359 = vsel %vm177, %v339, 0
    %v362 = vsel %vm177, %v340, 0
    %364 = vmatpush.bf16.msra.mxu0 0
    %365 = vmatpush.bf16.msra.mxu0 0
    %366 = vmatpush.bf16.msra.mxu0 0
    %367 = vmatpush.bf16.msra.mxu0 0
    %368 = vmatpush.bf16.msra.mxu0 0
    %369 = vmatpush.bf16.msra.mxu0 0
    %370 = vmatpush.bf16.msra.mxu0 %v355
    %371 = vmatpush.bf16.msra.mxu0 %v354
    %372 = vmatmul.bf16.gmra.mxu0 %v359
    %v373 = vpop.f32.mrf.mxu0
    %v374 = vadd.f32 0.0, %v373
    %v375 = vpop.f32.mrf.mxu0
    %v376 = vadd.f32 0.0, %v375
    %377 = vmatmul.bf16.gmra.mxu0 %v362
    %v378 = vpop.f32.mrf.mxu0
    %v379 = vadd.f32 0.0, %v378
    %v380 = vpop.f32.mrf.mxu0
    %381 = vdwg.mxu0
    %385 = vrot.lane.b32.xlu0 %v374, 64
    %v386 = vpop.permute.xlu0 %385
    %387 = vrot.lane.b32.xlu0 %v376, 64
    %v388 = vpop.permute.xlu0 %387
    %389 = vrot.lane.b32.xlu0 %v379, 64
    %v390 = vpop.permute.xlu0 %389
    %v394 = vsel %vm125, %v266, %v386
    %v395 = vsel %vm125, %v268, %v388
    %v396 = vsel %vm125, %v271, %v390
    %v397 = vpack.c.bf16 %v394, %v394
    %v398 = vpack.c.bf16 %v395, %v395
    %v399 = vpack.c.bf16 %v396, %v396
    %400 = vst [vmem:[#allocation2] sm:$0xf] %v397
    %401 = vst [vmem:[#allocation2 + $0x4] sm:$0xf] %v398
    %402 = vst [vmem:[#allocation2 + $0x8] sm:$0xf] %v399
    // Predicated region
    $region22: #{tpu_custom_call.1} parent=1 // pred_check
      _
    $region23: #{tpu_custom_call.1} parent=1 // pred_check_branch
      %404 = sbr.rel (0) target = $region25
    $region24: #{tpu_custom_call.1} parent=1 // pred_region
      %406 = vsyncadd [#allocation3], 0
      %s407 = sshll.u32 [#allocation2], 4
      %s408 = int_to_ptr.vmem [resolvable:$true] %s407
      %s409 = sshll.u32 %s5, 4
      %s410 = int_to_ptr.hbm [resolvable:$true] %s409
      %415 = dma.vmem_to_hbm [thread:$0]  %s408, 192, %s410, [#allocation3], 64, 64, 4
    $region25: #{tpu_custom_call.1} parent=1 // pred_fallthru
      _
    // Predicated region
    $region26: #{tpu_custom_call.1} parent=1 // pred_check
      _
    $region27: #{tpu_custom_call.1} parent=1 // pred_check_branch
      %417 = sbr.rel (0) target = $region29
    $region28: #{tpu_custom_call.1} parent=1 // pred_region
      %419 = dma.done [#allocation3], 192
    $region29: #{tpu_custom_call.1} parent=1 // pred_fallthru
      _
    %420 = vsyncpa [#allocation3], 1

</llo_original>
